<compile_context>
chip_gen: v5e
topology: v5e:2x2
jax: 0.10.0
libtpu: 0.0.40
codegen_flags: <defaults>
</compile_context>

<pallas_src>
import functools

import jax
import jax.numpy as jnp
from jax.experimental import pallas as pl
from jax.experimental.pallas import tpu as pltpu


# ----------------------------------------------------------------------------
# fused SE-block kernel: NB batch elements per grid step
# ----------------------------------------------------------------------------
def _se_block_kernel(x_ref, w1t_ref, b1_ref, w2t_ref, b2_ref, o_ref, *, inv_hw):
    """x_ref/o_ref: (NB, C, HW).  w1t: (C, Ch) f32, b1: (1, Ch) f32,
    w2t: (Ch, C) f32, b2: (1, C) f32.  All MLP math in f32."""
    # Global average pool over the spatial (lane) axis -> (NB, C).
    pooled = jnp.sum(x_ref[...].astype(jnp.float32), axis=-1) * inv_hw

    # SE MLP (squeeze -> relu -> excite -> sigmoid), fully f32, batched over NB.
    h = jnp.dot(pooled, w1t_ref[...],
                preferred_element_type=jnp.float32) + b1_ref[...]      # (NB, Ch)
    h = jnp.maximum(h, 0.0)                                            # relu
    s = jnp.dot(h, w2t_ref[...],
                preferred_element_type=jnp.float32) + b2_ref[...]      # (NB, C)
    s = jax.nn.sigmoid(s)                                              # se weight

    # Channel-wise rescale.  Re-read x_ref here so the big activation tile is
    # never live across the MLP (only `pooled`/`s` are).
    scale = s[:, :, None].astype(x_ref.dtype)                          # (NB, C, 1)
    o_ref[...] = (x_ref[...] * scale).astype(o_ref.dtype)


# ----------------------------------------------------------------------------
# block-size (NB) heuristic
# ----------------------------------------------------------------------------
def _pick_nb(N, C, HW, itemsize, target_block_bytes=2 << 20):
    """Largest divisor NB of N s.t. the block is <= target_block_bytes and the
    grid keeps >= 2 steps whenever N >= 2 (megacore / pipelining headroom)."""
    per_elem = C * HW * itemsize
    best = 1
    for nb in range(1, N + 1):
        if N % nb:
            continue
        steps = N // nb
        if nb * per_elem <= target_block_bytes and (steps >= 2 or N < 2):
            best = nb
    return best


# ----------------------------------------------------------------------------
# wrapper
# ----------------------------------------------------------------------------
def se_block(x, w1, b1, w2, b2):
    """SEBlock forward.

    x : (N, C, H, W)  (PyTorch NCHW convention)
    w1: (C//r, C), b1: (C//r,)   -- first nn.Linear (squeeze)
    w2: (C, C//r), b2: (C,)      -- second nn.Linear (excite)
    returns (N, C, H, W) with the same dtype as x.
    """
    N, C, H, W = x.shape
    Ch = w1.shape[0]
    HW = H * W
    itemsize = jnp.dtype(x.dtype).itemsize

    x2 = x.reshape(N, C, HW)                       # contiguous merge -> free

    # Pre-transpose the tiny weights in the wrapper (no in-kernel transpose).
    w1t = jnp.asarray(w1, jnp.float32).T           # (C, Ch)
    w2t = jnp.asarray(w2, jnp.float32).T           # (Ch, C)
    b1r = jnp.asarray(b1, jnp.float32).reshape(1, Ch)
    b2r = jnp.asarray(b2, jnp.float32).reshape(1, C)

    NB = _pick_nb(N, C, HW, itemsize)
    grid = (N // NB,)

    # Explicit VMEM budget: ~2x double-buffered (in + out) blocks + weights.
    block_bytes = NB * C * HW * itemsize
    weight_bytes = 4 * (C * Ch * 2 + Ch + C)
    vmem_limit = int(min(max(4 * block_bytes + 2 * weight_bytes + (2 << 20),
                             8 << 20),
                         64 << 20))

    out = pl.pallas_call(
        functools.partial(_se_block_kernel, inv_hw=1.0 / float(HW)),
        out_shape=jax.ShapeDtypeStruct((N, C, HW), x.dtype),
        grid=grid,
        in_specs=[
            pl.BlockSpec((NB, C, HW), lambda n: (n, 0, 0)),   # x (NB per step)
            pl.BlockSpec((C, Ch), lambda n: (0, 0)),          # w1.T
            pl.BlockSpec((1, Ch), lambda n: (0, 0)),          # b1
            pl.BlockSpec((Ch, C), lambda n: (0, 0)),          # w2.T
            pl.BlockSpec((1, C), lambda n: (0, 0)),           # b2
        ],
        out_specs=pl.BlockSpec((NB, C, HW), lambda n: (n, 0, 0)),
        compiler_params=pltpu.CompilerParams(
            dimension_semantics=("parallel",),                # v7x: 2 TCs
            vmem_limit_bytes=vmem_limit),
    )(x2, w1t, b1r, w2t, b2r)
    return out.reshape(N, C, H, W)


# ----------------------------------------------------------------------------
# pure-JAX reference (correctness check only)
# ----------------------------------------------------------------------------
def se_block_ref(x, w1, b1, w2, b2):
    pooled = jnp.mean(x, axis=(2, 3))                      # (N, C)
    h = jax.nn.relu(pooled @ w1.T + b1)                    # (N, C//r)
    s = jax.nn.sigmoid(h @ w2.T + b2)                      # (N, C)
    return x * s[:, :, None, None]


# ----------------------------------------------------------------------------
if __name__ == "__main__":
    key = jax.random.PRNGKey(0)
    kx, k1, k2, k3, k4 = jax.random.split(key, 5)

    # Small shapes consistent with the module: SEBlock(inplanes=128, r=16).
    # N=4 so the NB-batching path (NB=2, grid=(2,)) is actually exercised.
    N, C, H, W = 4, 128, 16, 16
    r = 16
    Ch = C // r

    x = jax.random.normal(kx, (N, C, H, W), jnp.float32)
    w1 = jax.random.normal(k1, (Ch, C), jnp.float32) * (1.0 / C) ** 0.5
    b1 = jax.random.normal(k2, (Ch,), jnp.float32) * 0.1
    w2 = jax.random.normal(k3, (C, Ch), jnp.float32) * (1.0 / Ch) ** 0.5
    b2 = jax.random.normal(k4, (C,), jnp.float32) * 0.1

    out = jax.jit(se_block)(x, w1, b1, w2, b2)
    jax.block_until_ready(out)

    ref = se_block_ref(x, w1, b1, w2, b2)
    assert out.shape == x.shape
    max_err = float(jnp.max(jnp.abs(out - ref)))
    # MLP fully in f32 now; only MXU default-precision rounding remains.
    assert max_err < 2e-2, f"max abs error too large: {max_err}"
    print("KERNEL_OK")
</pallas_src>

<mosaic_0001>
module attributes {stable_mosaic.version = 11 : i64} {
  func.func @_se_block_kernel(%arg0: i32, %arg1: memref<2x128x256xf32, #tpu.memory_space<vmem>>, %arg2: memref<128x8xf32, #tpu.memory_space<vmem>>, %arg3: memref<1x8xf32, #tpu.memory_space<vmem>>, %arg4: memref<8x128xf32, #tpu.memory_space<vmem>>, %arg5: memref<1x128xf32, #tpu.memory_space<vmem>>, %arg6: memref<2x128x256xf32, #tpu.memory_space<vmem>>) attributes {dimension_semantics = [#tpu.dimension_semantics<parallel>], iteration_bounds = array<i64: 2>, scalar_prefetch = 0 : i64, scratch_operands = 0 : i64, tpu.core_type = #tpu.core_type<tc>, window_params = [{transform_indices = @transform_0, window_bounds = array<i64: 2, 128, 256>}, {pipeline_mode = #tpu.pipeline_mode<synchronous>, transform_indices = @transform_1, window_bounds = array<i64: 128, 8>}, {pipeline_mode = #tpu.pipeline_mode<synchronous>, transform_indices = @transform_2, window_bounds = array<i64: 1, 8>}, {pipeline_mode = #tpu.pipeline_mode<synchronous>, transform_indices = @transform_3, window_bounds = array<i64: 8, 128>}, {pipeline_mode = #tpu.pipeline_mode<synchronous>, transform_indices = @transform_4, window_bounds = array<i64: 1, 128>}, {transform_indices = @transform_5, window_bounds = array<i64: 2, 128, 256>}]} {
    %c0 = arith.constant 0 : index
    %c0_0 = arith.constant 0 : index
    %c0_1 = arith.constant 0 : index
    %0 = vector.load %arg1[%c0, %c0_0, %c0_1] : memref<2x128x256xf32, #tpu.memory_space<vmem>>, vector<2x128x256xf32>
    %cst = arith.constant dense<0.000000e+00> : vector<2x128xf32>
    %1 = vector.multi_reduction <add>, %0, %cst [2] : vector<2x128x256xf32> to vector<2x128xf32>
    %cst_2 = arith.constant 3.906250e-03 : f32
    %2 = vector.broadcast %cst_2 : f32 to vector<2x128xf32>
    %3 = arith.mulf %1, %2 : vector<2x128xf32>
    %c0_3 = arith.constant 0 : index
    %c0_4 = arith.constant 0 : index
    %4 = vector.load %arg2[%c0_3, %c0_4] : memref<128x8xf32, #tpu.memory_space<vmem>>, vector<128x8xf32>
    %cst_5 = arith.constant dense<0.000000e+00> : vector<2x8xf32>
    %5 = tpu.matmul %3, %4, %cst_5 {dimension_numbers = #tpu.dot_dimension_numbers<[1], [0], [0], [1], [0, 0, 1, 1], [], []>} : vector<2x128xf32>, vector<128x8xf32>, vector<2x8xf32> -> vector<2x8xf32>
    %c0_6 = arith.constant 0 : index
    %c0_7 = arith.constant 0 : index
    %6 = vector.load %arg3[%c0_6, %c0_7] : memref<1x8xf32, #tpu.memory_space<vmem>>, vector<1x8xf32>
    %7 = vector.broadcast %6 : vector<1x8xf32> to vector<2x8xf32>
    %8 = arith.addf %5, %7 : vector<2x8xf32>
    %cst_8 = arith.constant 0.000000e+00 : f32
    %9 = vector.broadcast %cst_8 : f32 to vector<2x8xf32>
    %10 = arith.maximumf %8, %9 : vector<2x8xf32>
    %c0_9 = arith.constant 0 : index
    %c0_10 = arith.constant 0 : index
    %11 = vector.load %arg4[%c0_9, %c0_10] : memref<8x128xf32, #tpu.memory_space<vmem>>, vector<8x128xf32>
    %cst_11 = arith.constant dense<0.000000e+00> : vector<2x128xf32>
    %12 = tpu.matmul %10, %11, %cst_11 {dimension_numbers = #tpu.dot_dimension_numbers<[1], [0], [0], [1], [0, 0, 1, 1], [], []>} : vector<2x8xf32>, vector<8x128xf32>, vector<2x128xf32> -> vector<2x128xf32>
    %c0_12 = arith.constant 0 : index
    %c0_13 = arith.constant 0 : index
    %13 = vector.load %arg5[%c0_12, %c0_13] : memref<1x128xf32, #tpu.memory_space<vmem>>, vector<1x128xf32>
    %14 = vector.broadcast %13 : vector<1x128xf32> to vector<2x128xf32>
    %15 = arith.addf %12, %14 : vector<2x128xf32>
    %16 = arith.negf %15 : vector<2x128xf32>
    %17 = math.exp %16 : vector<2x128xf32>
    %cst_14 = arith.constant 1.000000e+00 : f32
    %18 = vector.broadcast %cst_14 : f32 to vector<2x128xf32>
    %19 = arith.addf %18, %17 : vector<2x128xf32>
    %20 = arith.divf %18, %19 : vector<2x128xf32>
    %21 = vector.shape_cast %20 : vector<2x128xf32> to vector<2x128x1xf32>
    %c0_15 = arith.constant 0 : index
    %c0_16 = arith.constant 0 : index
    %c0_17 = arith.constant 0 : index
    %22 = vector.load %arg1[%c0_15, %c0_16, %c0_17] : memref<2x128x256xf32, #tpu.memory_space<vmem>>, vector<2x128x256xf32>
    %23 = vector.broadcast %21 : vector<2x128x1xf32> to vector<2x128x256xf32>
    %24 = arith.mulf %22, %23 : vector<2x128x256xf32>
    %c0_18 = arith.constant 0 : index
    %c0_19 = arith.constant 0 : index
    %c0_20 = arith.constant 0 : index
    %25 = vector.load %arg6[%c0_18, %c0_19, %c0_20] : memref<2x128x256xf32, #tpu.memory_space<vmem>>, vector<2x128x256xf32>
    tpu.vector_store %arg6[%c0_18, %c0_19, %c0_20], %24 {strides = array<i32>} : memref<2x128x256xf32, #tpu.memory_space<vmem>>, vector<2x128x256xf32>,
    return
  }
  func.func @transform_0(%arg0: i32) -> (i32, i32, i32) {
    %c0_i32 = arith.constant 0 : i32
    %c0_i32_0 = arith.constant 0 : i32
    %c0_i32_1 = arith.constant 0 : i32
    return %arg0, %c0_i32, %c0_i32_0 : i32, i32, i32
  }
  func.func @transform_1(%arg0: i32) -> (i32, i32) {
    %c0_i32 = arith.constant 0 : i32
    %c0_i32_0 = arith.constant 0 : i32
    %c0_i32_1 = arith.constant 0 : i32
    return %c0_i32, %c0_i32_0 : i32, i32
  }
  func.func @transform_2(%arg0: i32) -> (i32, i32) {
    %c0_i32 = arith.constant 0 : i32
    %c0_i32_0 = arith.constant 0 : i32
    %c0_i32_1 = arith.constant 0 : i32
    return %c0_i32, %c0_i32_0 : i32, i32
  }
  func.func @transform_3(%arg0: i32) -> (i32, i32) {
    %c0_i32 = arith.constant 0 : i32
    %c0_i32_0 = arith.constant 0 : i32
    %c0_i32_1 = arith.constant 0 : i32
    return %c0_i32, %c0_i32_0 : i32, i32
  }
  func.func @transform_4(%arg0: i32) -> (i32, i32) {
    %c0_i32 = arith.constant 0 : i32
    %c0_i32_0 = arith.constant 0 : i32
    %c0_i32_1 = arith.constant 0 : i32
    return %c0_i32, %c0_i32_0 : i32, i32
  }
  func.func @transform_5(%arg0: i32) -> (i32, i32, i32) {
    %c0_i32 = arith.constant 0 : i32
    %c0_i32_0 = arith.constant 0 : i32
    %c0_i32_1 = arith.constant 0 : i32
    return %arg0, %c0_i32, %c0_i32_0 : i32, i32, i32
  }
}

</mosaic_0001>

<llo_original>
// kernel: se_block.1
$region0: #{se_block.1}
  #allocation0 [shape = 'u32[]', space=smem, size = 0x4, offset = 0x4, fixed_abs, tag = 'smem constant byte address 0x4 - core index']
  #allocation1 [shape = 'u32[72,128]{1,0:T(1,128)}', space=vmem, size = 0x9000, scoped, tag = 'internal scratch']
  %s0 = inlined_call_operand.vmem [shape: f32[4,128,256], index: 0, kind: input, shape index: {}]
  %s1 = inlined_call_operand.vmem [shape: f32[128,8], index: 1, kind: input, shape index: {}]
  %s2 = inlined_call_operand.vmem [shape: f32[1,8], index: 2, kind: input, shape index: {}]
  %s3 = inlined_call_operand.vmem [shape: f32[8,128], index: 3, kind: input, shape index: {}]
  %s4 = inlined_call_operand.vmem [shape: f32[1,128], index: 4, kind: input, shape index: {}]
  %s5 = inlined_call_operand.vmem [shape: f32[4,128,256], index: 5, kind: output, shape index: {}]
  %s6 = sld [smem:[#allocation0]]
  $region53: #{se_block.1} parent=0
    _
  %s8 = ssub.s32 1, %s6
  %s9 = scalar_select 0, %s8, %s6
  loop: start=0, step=1, limit=4
  $region2: #{se_block.1} parent=0 // loop_pre_header
    _
  $region3: #{se_block.1} parent=0 // loop_header
    %s11 = sphi 0, %s15
    %p12 = scmp.ge.s32.totalorder %s11, 4
    %s21 = sphi 0, %s23
    %s24 = sphi 0, %s21
    %s25 = sphi 0, %s24
    %s41 = sphi 0, %s25
    %s45 = sphi 0, %s45
    %s47 = sphi 0, %s45
    %s48 = sphi 0, %s47
    %s62 = sphi 0, %s48
    %s66 = sphi 0, %s66
    %s68 = sphi 0, %s66
    %s69 = sphi 0, %s68
    %s83 = sphi 0, %s69
    %s87 = sphi 0, %s87
    %s89 = sphi 0, %s87
    %s90 = sphi 0, %s89
    %s104 = sphi 0, %s90
    %s108 = sphi 0, %s108
    %s110 = sphi 0, %s108
    %s111 = sphi 0, %s110
    %s125 = sphi 0, %s111
    %s131 = sphi 0, %s133
    %s134 = sphi 0, %s131
    %s135 = sphi 0, %s134
    %s151 = sphi 0, %s135
  $region4: #{se_block.1} parent=0 // loop_header_branch
    %14 = sbr.rel (%p12) target = $region8
  $region5: #{se_block.1} parent=0 // loop_body
    %s16 = ssub.s32 %s11, 1
    %s17 = ssub.s32 %s11, 2
    %s18 = sadd.s32 %s11, 1
    %s19 = ssub.s32 %s11, %s18
    %p20 = scmp.eq.s32.totalorder %s19, 0
    %s22 = sadd.s32 %s21, 1
    %s23 = scalar_select %p20, %s21, %s22
    %p26 = pneg %p20
    %p27 = scmp.eq.s32.totalorder %s11, 1
    %p28 = por %p26, %p27
    %p29 = scmp.ne.s32.totalorder %s21, %s24
    %p30 = scmp.eq.s32.totalorder %s11, 0
    %p31 = por %p29, %p30
    %p32 = scmp.ne.s32.totalorder %s21, %s24
    %p33 = scmp.eq.s32.totalorder %s16, 1
    %p34 = por %p32, %p33
    %p35 = scmp.ne.s32.totalorder %s24, %s25
    %p36 = scmp.eq.s32.totalorder %s16, 0
    %p37 = por %p35, %p36
    %p38 = scmp.ne.s32.totalorder %s24, %s25
    %p39 = scmp.eq.s32.totalorder %s17, 1
    %p40 = por %p38, %p39
    %p42 = scmp.ne.s32.totalorder %s25, %s41
    %p43 = scmp.eq.s32.totalorder %s17, 0
    %p44 = por %p42, %p43
    %s46 = sadd.s32 %s45, 1
    %p49 = scmp.eq.s32.totalorder %s11, 1
    %p50 = scmp.ne.s32.totalorder %s45, %s47
    %p51 = scmp.eq.s32.totalorder %s11, 0
    %p52 = por %p50, %p51
    %p53 = scmp.ne.s32.totalorder %s45, %s47
    %p54 = scmp.eq.s32.totalorder %s16, 1
    %p55 = por %p53, %p54
    %p56 = scmp.ne.s32.totalorder %s47, %s48
    %p57 = scmp.eq.s32.totalorder %s16, 0
    %p58 = por %p56, %p57
    %p59 = scmp.ne.s32.totalorder %s47, %s48
    %p60 = scmp.eq.s32.totalorder %s17, 1
    %p61 = por %p59, %p60
    %p63 = scmp.ne.s32.totalorder %s48, %s62
    %p64 = scmp.eq.s32.totalorder %s17, 0
    %p65 = por %p63, %p64
    %s67 = sadd.s32 %s66, 1
    %p70 = scmp.eq.s32.totalorder %s11, 1
    %p71 = scmp.ne.s32.totalorder %s66, %s68
    %p72 = scmp.eq.s32.totalorder %s11, 0
    %p73 = por %p71, %p72
    %p74 = scmp.ne.s32.totalorder %s66, %s68
    %p75 = scmp.eq.s32.totalorder %s16, 1
    %p76 = por %p74, %p75
    %p77 = scmp.ne.s32.totalorder %s68, %s69
    %p78 = scmp.eq.s32.totalorder %s16, 0
    %p79 = por %p77, %p78
    %p80 = scmp.ne.s32.totalorder %s68, %s69
    %p81 = scmp.eq.s32.totalorder %s17, 1
    %p82 = por %p80, %p81
    %p84 = scmp.ne.s32.totalorder %s69, %s83
    %p85 = scmp.eq.s32.totalorder %s17, 0
    %p86 = por %p84, %p85
    %s88 = sadd.s32 %s87, 1
    %p91 = scmp.eq.s32.totalorder %s11, 1
    %p92 = scmp.ne.s32.totalorder %s87, %s89
    %p93 = scmp.eq.s32.totalorder %s11, 0
    %p94 = por %p92, %p93
    %p95 = scmp.ne.s32.totalorder %s87, %s89
    %p96 = scmp.eq.s32.totalorder %s16, 1
    %p97 = por %p95, %p96
    %p98 = scmp.ne.s32.totalorder %s89, %s90
    %p99 = scmp.eq.s32.totalorder %s16, 0
    %p100 = por %p98, %p99
    %p101 = scmp.ne.s32.totalorder %s89, %s90
    %p102 = scmp.eq.s32.totalorder %s17, 1
    %p103 = por %p101, %p102
    %p105 = scmp.ne.s32.totalorder %s90, %s104
    %p106 = scmp.eq.s32.totalorder %s17, 0
    %p107 = por %p105, %p106
    %s109 = sadd.s32 %s108, 1
    %p112 = scmp.eq.s32.totalorder %s11, 1
    %p113 = scmp.ne.s32.totalorder %s108, %s110
    %p114 = scmp.eq.s32.totalorder %s11, 0
    %p115 = por %p113, %p114
    %p116 = scmp.ne.s32.totalorder %s108, %s110
    %p117 = scmp.eq.s32.totalorder %s16, 1
    %p118 = por %p116, %p117
    %p119 = scmp.ne.s32.totalorder %s110, %s111
    %p120 = scmp.eq.s32.totalorder %s16, 0
    %p121 = por %p119, %p120
    %p122 = scmp.ne.s32.totalorder %s110, %s111
    %p123 = scmp.eq.s32.totalorder %s17, 1
    %p124 = por %p122, %p123
    %p126 = scmp.ne.s32.totalorder %s111, %s125
    %p127 = scmp.eq.s32.totalorder %s17, 0
    %p128 = por %p126, %p127
    %s129 = ssub.s32 %s11, %s18
    %p130 = scmp.eq.s32.totalorder %s129, 0
    %s132 = sadd.s32 %s131, 1
    %s133 = scalar_select %p130, %s131, %s132
    %p136 = pneg %p130
    %p137 = scmp.eq.s32.totalorder %s11, 1
    %p138 = por %p136, %p137
    %p139 = scmp.ne.s32.totalorder %s131, %s134
    %p140 = scmp.eq.s32.totalorder %s11, 0
    %p141 = por %p139, %p140
    %p142 = scmp.ne.s32.totalorder %s131, %s134
    %p143 = scmp.eq.s32.totalorder %s16, 1
    %p144 = por %p142, %p143
    %p145 = scmp.ne.s32.totalorder %s134, %s135
    %p146 = scmp.eq.s32.totalorder %s16, 0
    %p147 = por %p145, %p146
    %p148 = scmp.ne.s32.totalorder %s134, %s135
    %p149 = scmp.eq.s32.totalorder %s17, 1
    %p150 = por %p148, %p149
    %p152 = scmp.ne.s32.totalorder %s135, %s151
    %p153 = scmp.eq.s32.totalorder %s17, 0
    %p154 = por %p152, %p153
    %p155 = scmp.le.s32.totalorder 1, %s11
    %p156 = scmp.lt.s32.totalorder %s11, 3
    %p157 = pnand %p155, %p156
    %p158 = pneg %p157
    // Predicated region
    $region9: #{se_block.1} parent=5 // pred_check
      _
    $region10: #{se_block.1} parent=5 // pred_check_branch
      %160 = sbr.rel (%p157) target = $region12
    $region11: #{se_block.1} parent=5 // pred_region
      %s161 = ssub.s32 %s11, 1
      // Predicated region
      $region13: #{se_block.1} parent=11 // pred_check
        %p162 = pneg %p58
      $region14: #{se_block.1} parent=11 // pred_check_branch
        %164 = sbr.rel (%p162) target = $region16
      $region15: #{se_block.1} parent=11 // pred_region
        _
      $region16: #{se_block.1} parent=11 // pred_fallthru
        _
      // Predicated region
      $region17: #{se_block.1} parent=11 // pred_check
        %p165 = pneg %p79
      $region18: #{se_block.1} parent=11 // pred_check_branch
        %167 = sbr.rel (%p165) target = $region20
      $region19: #{se_block.1} parent=11 // pred_region
        _
      $region20: #{se_block.1} parent=11 // pred_fallthru
        _
      // Predicated region
      $region21: #{se_block.1} parent=11 // pred_check
        %p168 = pneg %p100
      $region22: #{se_block.1} parent=11 // pred_check_branch
        %170 = sbr.rel (%p168) target = $region24
      $region23: #{se_block.1} parent=11 // pred_region
        _
      $region24: #{se_block.1} parent=11 // pred_fallthru
        _
      // Predicated region
      $region25: #{se_block.1} parent=11 // pred_check
        %p171 = pneg %p121
      $region26: #{se_block.1} parent=11 // pred_check_branch
        %173 = sbr.rel (%p171) target = $region28
      $region27: #{se_block.1} parent=11 // pred_region
        _
      $region28: #{se_block.1} parent=11 // pred_fallthru
        _
    $region12: #{se_block.1} parent=5 // pred_fallthru
      _
    %p174 = scmp.lt.s32.totalorder %s11, 2
    // Predicated region
    $region29: #{se_block.1} parent=5 // pred_check
      %p175 = pneg %p174
    $region30: #{se_block.1} parent=5 // pred_check_branch
      %177 = sbr.rel (%p175) target = $region32
    $region31: #{se_block.1} parent=5 // pred_region
      // Predicated region
      $region33: #{se_block.1} parent=31 // pred_check
        %p178 = pneg %p31
      $region34: #{se_block.1} parent=31 // pred_check_branch
        %180 = sbr.rel (%p178) target = $region36
      $region35: #{se_block.1} parent=31 // pred_region
        %s181 = smul.u32 2, %s11
        %p182 = scmp.lt.s32.totalorder %s181, 3
        %s183 = scalar_select %p182, %s181, 3
        %s184 = smul.addr %s183, 32
        %s185 = smul.addr %s184, 8
        %s186 = scalar_lea.vmem %s0, %s185
        %s187 = smul.u32 2, %s11
      $region36: #{se_block.1} parent=31 // pred_fallthru
        _
    $region32: #{se_block.1} parent=5 // pred_fallthru
      _
    %p188 = scmp.le.s32.totalorder 1, %s11
    %p189 = scmp.lt.s32.totalorder %s11, 3
    %p190 = pnand %p188, %p189
    %p191 = pneg %p190
    // Predicated region
    $region37: #{se_block.1} parent=5 // pred_check
      _
    $region38: #{se_block.1} parent=5 // pred_check_branch
      %193 = sbr.rel (%p190) target = $region40
    $region39: #{se_block.1} parent=5 // pred_region
      %s194 = ssub.s32 %s11, 1
      %s195 = smul.u32 2, %s16
      %p196 = scmp.lt.s32.totalorder %s195, 3
      %s197 = scalar_select %p196, %s195, 3
      %s198 = smul.addr %s197, 32
      %s199 = smul.addr %s198, 8
      %s200 = scalar_lea.vmem %s0, %s199
      %p201 = pneg %p37
      %p202 = pneg %p34
      %p203 = pneg %p58
      %p204 = pneg %p55
      %p205 = pneg %p79
      %p206 = pneg %p76
      %p207 = pneg %p100
      %p208 = pneg %p97
      %p209 = pneg %p121
      %p210 = pneg %p118
      %p211 = pneg %p147
      %p212 = pneg %p144
      %s213 = smul.u32 2, %s16
      %p214 = scmp.lt.s32.totalorder %s213, 3
      %s215 = scalar_select %p214, %s213, 3
      %s216 = smul.addr %s215, 32
      %s217 = smul.addr %s216, 8
      %s218 = scalar_lea.vmem %s5, %s217
      %s219 = smul.u32 2, %s16
      %p220 = scmp.lt.s32.totalorder %s219, 3
      %s221 = scalar_select %p220, %s219, 3
      %s222 = smul.addr %s221, 32
      %s223 = smul.addr %s222, 8
      %s224 = scalar_lea.vmem %s0, %s223
      %s225 = smul.u32 2, %s16
      %s226 = smul.u32 2, %s16
      %p227 = scmp.lt.s32.totalorder %s226, 3
      %s228 = scalar_select %p227, %s226, 3
      %s229 = smul.addr %s228, 32
      %s230 = smul.addr %s229, 8
      %s231 = scalar_lea.vmem %s5, %s230
      %s232 = smul.u32 2, %s16
      %v233 = vld [vmem:[%s224] sm:$0xff]
      %v234 = vld [vmem:[%s224 + $0x8] sm:$0xff]
      %v235 = vld [vmem:[%s224 + $0x10] sm:$0xff]
      %v236 = vld [vmem:[%s224 + $0x18] sm:$0xff]
      %v237 = vld [vmem:[%s224 + $0x20] sm:$0xff]
      %v238 = vld [vmem:[%s224 + $0x28] sm:$0xff]
      %v239 = vld [vmem:[%s224 + $0x30] sm:$0xff]
      %v240 = vld [vmem:[%s224 + $0x38] sm:$0xff]
      %v241 = vld [vmem:[%s224 + $0x40] sm:$0xff]
      %v242 = vld [vmem:[%s224 + $0x48] sm:$0xff]
      %v243 = vld [vmem:[%s224 + $0x50] sm:$0xff]
      %v244 = vld [vmem:[%s224 + $0x58] sm:$0xff]
      %v245 = vld [vmem:[%s224 + $0x60] sm:$0xff]
      %v246 = vld [vmem:[%s224 + $0x68] sm:$0xff]
      %v247 = vld [vmem:[%s224 + $0x70] sm:$0xff]
      %v248 = vld [vmem:[%s224 + $0x78] sm:$0xff]
      %v249 = vld [vmem:[%s224 + $0x80] sm:$0xff]
      %v250 = vld [vmem:[%s224 + $0x88] sm:$0xff]
      %v251 = vld [vmem:[%s224 + $0x90] sm:$0xff]
      %v252 = vld [vmem:[%s224 + $0x98] sm:$0xff]
      %v253 = vld [vmem:[%s224 + $0xa0] sm:$0xff]
      %v254 = vld [vmem:[%s224 + $0xa8] sm:$0xff]
      %v255 = vld [vmem:[%s224 + $0xb0] sm:$0xff]
      %v256 = vld [vmem:[%s224 + $0xb8] sm:$0xff]
      %v257 = vld [vmem:[%s224 + $0xc0] sm:$0xff]
      %v258 = vld [vmem:[%s224 + $0xc8] sm:$0xff]
      %v259 = vld [vmem:[%s224 + $0xd0] sm:$0xff]
      %v260 = vld [vmem:[%s224 + $0xd8] sm:$0xff]
      %v261 = vld [vmem:[%s224 + $0xe0] sm:$0xff]
      %v262 = vld [vmem:[%s224 + $0xe8] sm:$0xff]
      %v263 = vld [vmem:[%s224 + $0xf0] sm:$0xff]
      %v264 = vld [vmem:[%s224 + $0xf8] sm:$0xff]
      %v265 = vld [vmem:[%s224 + $0x100] sm:$0xff]
      %v266 = vld [vmem:[%s224 + $0x108] sm:$0xff]
      %v267 = vld [vmem:[%s224 + $0x110] sm:$0xff]
      %v268 = vld [vmem:[%s224 + $0x118] sm:$0xff]
      %v269 = vld [vmem:[%s224 + $0x120] sm:$0xff]
      %v270 = vld [vmem:[%s224 + $0x128] sm:$0xff]
      %v271 = vld [vmem:[%s224 + $0x130] sm:$0xff]
      %v272 = vld [vmem:[%s224 + $0x138] sm:$0xff]
      %v273 = vld [vmem:[%s224 + $0x140] sm:$0xff]
      %v274 = vld [vmem:[%s224 + $0x148] sm:$0xff]
      %v275 = vld [vmem:[%s224 + $0x150] sm:$0xff]
      %v276 = vld [vmem:[%s224 + $0x158] sm:$0xff]
      %v277 = vld [vmem:[%s224 + $0x160] sm:$0xff]
      %v278 = vld [vmem:[%s224 + $0x168] sm:$0xff]
      %v279 = vld [vmem:[%s224 + $0x170] sm:$0xff]
      %v280 = vld [vmem:[%s224 + $0x178] sm:$0xff]
      %v281 = vld [vmem:[%s224 + $0x180] sm:$0xff]
      %v282 = vld [vmem:[%s224 + $0x188] sm:$0xff]
      %v283 = vld [vmem:[%s224 + $0x190] sm:$0xff]
      %v284 = vld [vmem:[%s224 + $0x198] sm:$0xff]
      %v285 = vld [vmem:[%s224 + $0x1a0] sm:$0xff]
      %v286 = vld [vmem:[%s224 + $0x1a8] sm:$0xff]
      %v287 = vld [vmem:[%s224 + $0x1b0] sm:$0xff]
      %v288 = vld [vmem:[%s224 + $0x1b8] sm:$0xff]
      %v289 = vld [vmem:[%s224 + $0x1c0] sm:$0xff]
      %v290 = vld [vmem:[%s224 + $0x1c8] sm:$0xff]
      %v291 = vld [vmem:[%s224 + $0x1d0] sm:$0xff]
      %v292 = vld [vmem:[%s224 + $0x1d8] sm:$0xff]
      %v293 = vld [vmem:[%s224 + $0x1e0] sm:$0xff]
      %v294 = vld [vmem:[%s224 + $0x1e8] sm:$0xff]
      %v295 = vld [vmem:[%s224 + $0x1f0] sm:$0xff]
      %v296 = vld [vmem:[%s224 + $0x1f8] sm:$0xff]
      %v297 = vadd.f32 %v233, %v234
      %298 = vadd.xlane.f32.xlu0 %v297
      %v299 = vpop.xlane.xlu0 %298
      %v300 = vadd.f32 %v235, %v236
      %301 = vadd.xlane.f32.xlu0 %v300
      %v302 = vpop.xlane.xlu0 %301
      %v303 = vadd.f32 %v237, %v238
      %304 = vadd.xlane.f32.xlu0 %v303
      %v305 = vpop.xlane.xlu0 %304
      %v306 = vadd.f32 %v239, %v240
      %307 = vadd.xlane.f32.xlu0 %v306
      %v308 = vpop.xlane.xlu0 %307
      %v309 = vadd.f32 %v241, %v242
      %310 = vadd.xlane.f32.xlu0 %v309
      %v311 = vpop.xlane.xlu0 %310
      %v312 = vadd.f32 %v243, %v244
      %313 = vadd.xlane.f32.xlu0 %v312
      %v314 = vpop.xlane.xlu0 %313
      %v315 = vadd.f32 %v245, %v246
      %316 = vadd.xlane.f32.xlu0 %v315
      %v317 = vpop.xlane.xlu0 %316
      %v318 = vadd.f32 %v247, %v248
      %319 = vadd.xlane.f32.xlu0 %v318
      %v320 = vpop.xlane.xlu0 %319
      %v321 = vadd.f32 %v249, %v250
      %322 = vadd.xlane.f32.xlu0 %v321
      %v323 = vpop.xlane.xlu0 %322
      %v324 = vadd.f32 %v251, %v252
      %325 = vadd.xlane.f32.xlu0 %v324
      %v326 = vpop.xlane.xlu0 %325
      %v327 = vadd.f32 %v253, %v254
      %328 = vadd.xlane.f32.xlu0 %v327
      %v329 = vpop.xlane.xlu0 %328
      %v330 = vadd.f32 %v255, %v256
      %331 = vadd.xlane.f32.xlu0 %v330
      %v332 = vpop.xlane.xlu0 %331
      %v333 = vadd.f32 %v257, %v258
      %334 = vadd.xlane.f32.xlu0 %v333
      %v335 = vpop.xlane.xlu0 %334
      %v336 = vadd.f32 %v259, %v260
      %337 = vadd.xlane.f32.xlu0 %v336
      %v338 = vpop.xlane.xlu0 %337
      %v339 = vadd.f32 %v261, %v262
      %340 = vadd.xlane.f32.xlu0 %v339
      %v341 = vpop.xlane.xlu0 %340
      %v342 = vadd.f32 %v263, %v264
      %343 = vadd.xlane.f32.xlu0 %v342
      %v344 = vpop.xlane.xlu0 %343
      %v345 = vadd.f32 %v265, %v266
      %346 = vadd.xlane.f32.xlu0 %v345
      %v347 = vpop.xlane.xlu0 %346
      %v348 = vadd.f32 %v267, %v268
      %349 = vadd.xlane.f32.xlu0 %v348
      %v350 = vpop.xlane.xlu0 %349
      %v351 = vadd.f32 %v269, %v270
      %352 = vadd.xlane.f32.xlu0 %v351
      %v353 = vpop.xlane.xlu0 %352
      %v354 = vadd.f32 %v271, %v272
      %355 = vadd.xlane.f32.xlu0 %v354
      %v356 = vpop.xlane.xlu0 %355
      %v357 = vadd.f32 %v273, %v274
      %358 = vadd.xlane.f32.xlu0 %v357
      %v359 = vpop.xlane.xlu0 %358
      %v360 = vadd.f32 %v275, %v276
      %361 = vadd.xlane.f32.xlu0 %v360
      %v362 = vpop.xlane.xlu0 %361
      %v363 = vadd.f32 %v277, %v278
      %364 = vadd.xlane.f32.xlu0 %v363
      %v365 = vpop.xlane.xlu0 %364
      %v366 = vadd.f32 %v279, %v280
      %367 = vadd.xlane.f32.xlu0 %v366
      %v368 = vpop.xlane.xlu0 %367
      %v369 = vadd.f32 %v281, %v282
      %370 = vadd.xlane.f32.xlu0 %v369
      %v371 = vpop.xlane.xlu0 %370
      %v372 = vadd.f32 %v283, %v284
      %373 = vadd.xlane.f32.xlu0 %v372
      %v374 = vpop.xlane.xlu0 %373
      %v375 = vadd.f32 %v285, %v286
      %376 = vadd.xlane.f32.xlu0 %v375
      %v377 = vpop.xlane.xlu0 %376
      %v378 = vadd.f32 %v287, %v288
      %379 = vadd.xlane.f32.xlu0 %v378
      %v380 = vpop.xlane.xlu0 %379
      %v381 = vadd.f32 %v289, %v290
      %382 = vadd.xlane.f32.xlu0 %v381
      %v383 = vpop.xlane.xlu0 %382
      %v384 = vadd.f32 %v291, %v292
      %385 = vadd.xlane.f32.xlu0 %v384
      %v386 = vpop.xlane.xlu0 %385
      %v387 = vadd.f32 %v293, %v294
      %388 = vadd.xlane.f32.xlu0 %v387
      %v389 = vpop.xlane.xlu0 %388
      %v390 = vadd.f32 %v295, %v296
      %391 = vadd.xlane.f32.xlu0 %v390
      %v392 = vpop.xlane.xlu0 %391
      %v393 = vmul.f32 %v299, 0.00390625
      %v394 = vmul.f32 %v302, 0.00390625
      %v395 = vmul.f32 %v305, 0.00390625
      %v396 = vmul.f32 %v308, 0.00390625
      %v397 = vmul.f32 %v311, 0.00390625
      %v398 = vmul.f32 %v314, 0.00390625
      %v399 = vmul.f32 %v317, 0.00390625
      %v400 = vmul.f32 %v320, 0.00390625
      %v401 = vmul.f32 %v323, 0.00390625
      %v402 = vmul.f32 %v326, 0.00390625
      %v403 = vmul.f32 %v329, 0.00390625
      %v404 = vmul.f32 %v332, 0.00390625
      %v405 = vmul.f32 %v335, 0.00390625
      %v406 = vmul.f32 %v338, 0.00390625
      %v407 = vmul.f32 %v341, 0.00390625
      %v408 = vmul.f32 %v344, 0.00390625
      %v409 = vmul.f32 %v347, 0.00390625
      %v410 = vmul.f32 %v350, 0.00390625
      %v411 = vmul.f32 %v353, 0.00390625
      %v412 = vmul.f32 %v356, 0.00390625
      %v413 = vmul.f32 %v359, 0.00390625
      %v414 = vmul.f32 %v362, 0.00390625
      %v415 = vmul.f32 %v365, 0.00390625
      %v416 = vmul.f32 %v368, 0.00390625
      %v417 = vmul.f32 %v371, 0.00390625
      %v418 = vmul.f32 %v374, 0.00390625
      %v419 = vmul.f32 %v377, 0.00390625
      %v420 = vmul.f32 %v380, 0.00390625
      %v421 = vmul.f32 %v383, 0.00390625
      %v422 = vmul.f32 %v386, 0.00390625
      %v423 = vmul.f32 %v389, 0.00390625
      %v424 = vmul.f32 %v392, 0.00390625
      %v425 = vld [vmem:[%s1] sm:$0xff]
      %v426 = vld [vmem:[%s1 + $0x8] sm:$0xff]
      %v427 = vld [vmem:[%s1 + $0x10] sm:$0xff]
      %v428 = vld [vmem:[%s1 + $0x18] sm:$0xff]
      %v429 = vld [vmem:[%s1 + $0x20] sm:$0xff]
      %v430 = vld [vmem:[%s1 + $0x28] sm:$0xff]
      %v431 = vld [vmem:[%s1 + $0x30] sm:$0xff]
      %v432 = vld [vmem:[%s1 + $0x38] sm:$0xff]
      %v433 = vld [vmem:[%s1 + $0x40] sm:$0xff]
      %v434 = vld [vmem:[%s1 + $0x48] sm:$0xff]
      %v435 = vld [vmem:[%s1 + $0x50] sm:$0xff]
      %v436 = vld [vmem:[%s1 + $0x58] sm:$0xff]
      %v437 = vld [vmem:[%s1 + $0x60] sm:$0xff]
      %v438 = vld [vmem:[%s1 + $0x68] sm:$0xff]
      %v439 = vld [vmem:[%s1 + $0x70] sm:$0xff]
      %v440 = vld [vmem:[%s1 + $0x78] sm:$0xff]
      %v441 = vld [vmem:[%s2] sm:$0x1]
      %v443 = vperm.slane %v441, 0
      %v477 = vlaneseq
      %v478 = vand.u32 %v477, 127
      %v479 = vperm.slane %v393, %v478
      %v480 = vadd.s32 %v478, 4294967288
      %v481 = vperm.slane %v394, %v480
      %vm482 = vcmask 130112
      %v483 = vsel %vm482, %v481, %v479
      %v484 = vadd.s32 %v478, 4294967280
      %v485 = vperm.slane %v395, %v484
      %vm486 = vcmask 195712
      %v487 = vsel %vm486, %v485, %v483
      %v488 = vadd.s32 %v478, 4294967272
      %v489 = vperm.slane %v396, %v488
      %vm490 = vcmask 261312
      %v491 = vsel %vm490, %v489, %v487
      %v492 = vadd.s32 %v478, 4294967264
      %v493 = vperm.slane %v397, %v492
      %vm494 = vcmask 326912
      %v495 = vsel %vm494, %v493, %v491
      %v496 = vadd.s32 %v478, 4294967256
      %v497 = vperm.slane %v398, %v496
      %vm498 = vcmask 392512
      %v499 = vsel %vm498, %v497, %v495
      %v500 = vadd.s32 %v478, 4294967248
      %v501 = vperm.slane %v399, %v500
      %vm502 = vcmask 458112
      %v503 = vsel %vm502, %v501, %v499
      %v504 = vadd.s32 %v478, 4294967240
      %v505 = vperm.slane %v400, %v504
      %vm506 = vcmask 523712
      %v507 = vsel %vm506, %v505, %v503
      %v508 = vadd.s32 %v478, 4294967232
      %v509 = vperm.slane %v401, %v508
      %vm510 = vcmask 589312
      %v511 = vsel %vm510, %v509, %v507
      %v512 = vadd.s32 %v478, 4294967224
      %v513 = vperm.slane %v402, %v512
      %vm514 = vcmask 654912
      %v515 = vsel %vm514, %v513, %v511
      %v516 = vadd.s32 %v478, 4294967216
      %v517 = vperm.slane %v403, %v516
      %vm518 = vcmask 720512
      %v519 = vsel %vm518, %v517, %v515
      %v520 = vadd.s32 %v478, 4294967208
      %v521 = vperm.slane %v404, %v520
      %vm522 = vcmask 786112
      %v523 = vsel %vm522, %v521, %v519
      %v524 = vadd.s32 %v478, 4294967200
      %v525 = vperm.slane %v405, %v524
      %vm526 = vcmask 851712
      %v527 = vsel %vm526, %v525, %v523
      %v528 = vadd.s32 %v478, 4294967192
      %v529 = vperm.slane %v406, %v528
      %vm530 = vcmask 917312
      %v531 = vsel %vm530, %v529, %v527
      %v532 = vadd.s32 %v478, 4294967184
      %v533 = vperm.slane %v407, %v532
      %vm534 = vcmask 982912
      %v535 = vsel %vm534, %v533, %v531
      %v536 = vadd.s32 %v478, 4294967176
      %v537 = vperm.slane %v408, %v536
      %vm538 = vcmask 1048512
      %v539 = vsel %vm538, %v537, %v535
      %v540 = vperm.slane %v409, %v478
      %v541 = vperm.slane %v410, %v480
      %v542 = vsel %vm482, %v541, %v540
      %v543 = vperm.slane %v411, %v484
      %v544 = vsel %vm486, %v543, %v542
      %v545 = vperm.slane %v412, %v488
      %v546 = vsel %vm490, %v545, %v544
      %v547 = vperm.slane %v413, %v492
      %v548 = vsel %vm494, %v547, %v546
      %v549 = vperm.slane %v414, %v496
      %v550 = vsel %vm498, %v549, %v548
      %v551 = vperm.slane %v415, %v500
      %v552 = vsel %vm502, %v551, %v550
      %v553 = vperm.slane %v416, %v504
      %v554 = vsel %vm506, %v553, %v552
      %v555 = vperm.slane %v417, %v508
      %v556 = vsel %vm510, %v555, %v554
      %v557 = vperm.slane %v418, %v512
      %v558 = vsel %vm514, %v557, %v556
      %v559 = vperm.slane %v419, %v516
      %v560 = vsel %vm518, %v559, %v558
      %v561 = vperm.slane %v420, %v520
      %v562 = vsel %vm522, %v561, %v560
      %v563 = vperm.slane %v421, %v524
      %v564 = vsel %vm526, %v563, %v562
      %v565 = vperm.slane %v422, %v528
      %v566 = vsel %vm530, %v565, %v564
      %v567 = vperm.slane %v423, %v532
      %v568 = vsel %vm534, %v567, %v566
      %v569 = vperm.slane %v424, %v536
      %v570 = vsel %vm538, %v569, %v568
      %vm571 = vcmask 1041409
      %v572 = vsel %vm571, %v570, %v539
      %574 = vmatpush.msra.mxu0 %v440
      %575 = vmatpush.msra.mxu0 %v439
      %576 = vmatpush.msra.mxu0 %v438
      %577 = vmatpush.msra.mxu0 %v437
      %578 = vmatpush.msra.mxu0 %v436
      %579 = vmatpush.msra.mxu0 %v435
      %580 = vmatpush.msra.mxu0 %v434
      %581 = vmatpush.msra.mxu0 %v433
      %582 = vmatpush.msra.mxu0 %v432
      %583 = vmatpush.msra.mxu0 %v431
      %584 = vmatpush.msra.mxu0 %v430
      %585 = vmatpush.msra.mxu0 %v429
      %586 = vmatpush.msra.mxu0 %v428
      %587 = vmatpush.msra.mxu0 %v427
      %588 = vmatpush.msra.mxu0 %v426
      %589 = vmatpush.msra.mxu0 %v425
      %590 = vmatmul.f32.gmra.mxu0 %v572
      %v591 = vpop.f32.mrf.mxu0
      %v592 = vadd.f32 %v443, %v591
      %593 = vdwg.mxu0
      %v594 = vmax.f32 %v592, 0.0
      %v595 = vld [vmem:[%s3] sm:$0xff]
      %v596 = vld [vmem:[%s4] sm:$0x1]
      %v598 = vperm.slane %v596, 0
      %vm600 = vcmask 64512
      %v602 = vsel %vm600, %v594, 0
      %604 = vmatpush.msra.mxu0 0.0
      %605 = vmatpush.msra.mxu0 0.0
      %606 = vmatpush.msra.mxu0 0.0
      %607 = vmatpush.msra.mxu0 0.0
      %608 = vmatpush.msra.mxu0 0.0
      %609 = vmatpush.msra.mxu0 0.0
      %610 = vmatpush.msra.mxu0 0.0
      %611 = vmatpush.msra.mxu0 0.0
      %612 = vmatpush.msra.mxu0 0.0
      %613 = vmatpush.msra.mxu0 0.0
      %614 = vmatpush.msra.mxu0 0.0
      %615 = vmatpush.msra.mxu0 0.0
      %616 = vmatpush.msra.mxu0 0.0
      %617 = vmatpush.msra.mxu0 0.0
      %618 = vmatpush.msra.mxu0 0.0
      %619 = vmatpush.msra.mxu0 %v595
      %620 = vmatmul.f32.gmra.mxu0 %v602
      %v621 = vpop.f32.mrf.mxu0
      %v622 = vadd.f32 %v598, %v621
      %623 = vdwg.mxu0
      %v624 = vxor.u32 %v622, 2147483648
      %v625 = vmul.f32 %v624, 1.442695
      %v626 = vpow.pop %v625
      %v627 = vadd.f32 %v626, 1.0
      %v628 = vrcp.pop %v627
      %v629 = vmul.f32 %v627, %v628
      %v630 = vsub.f32 1.0, %v629
      %v631 = vmul.f32 %v628, %v630
      %v632 = vadd.f32 %v628, %v631
      %vm633 = vweird.f32 %v627
      %vm634 = vweird.f32 %v628
      %vm635 = vmor %vm633, %vm634
      %v636 = vsel %vm635, %v628, %v632
      %v637 = vand.u32 2147483647, %v627
      %vm638 = vcmp.eq.f32.partialorder %v637, 8.507059e+37
      %v639 = vand.u32 %v627, 2147483648
      %v640 = vor.u32 1.1754944e-38, %v639
      %v641 = vsel %vm638, %v640, %v636
      %v642 = vmul.f32 1.0, %v641
      %v643 = vperm.slane %v642, 0
      %v644 = vlaneseq
      %v645 = vshrl.u32 %v644, 7
      %647 = vset.pattern.permute.xlu0 %v645
      %648 = vperm.xlu0 %647, %v643
      %v649 = vpop.permute.xlu0 %648
      %v650 = vlaneseq
      %v651 = vshrl.u32 %v650, 7
      %v652 = vadd.s32 %v651, 8
      %653 = vset.pattern.permute.xlu0 %v652
      %654 = vperm.xlu0 %653, %v643
      %v655 = vpop.permute.xlu0 %654
      %v656 = vlaneseq
      %v657 = vshrl.u32 %v656, 7
      %v658 = vadd.s32 %v657, 16
      %659 = vset.pattern.permute.xlu0 %v658
      %660 = vperm.xlu0 %659, %v643
      %v661 = vpop.permute.xlu0 %660
      %v662 = vlaneseq
      %v663 = vshrl.u32 %v662, 7
      %v664 = vadd.s32 %v663, 24
      %665 = vset.pattern.permute.xlu0 %v664
      %666 = vperm.xlu0 %665, %v643
      %v667 = vpop.permute.xlu0 %666
      %v668 = vlaneseq
      %v669 = vshrl.u32 %v668, 7
      %v670 = vadd.s32 %v669, 32
      %671 = vset.pattern.permute.xlu0 %v670
      %672 = vperm.xlu0 %671, %v643
      %v673 = vpop.permute.xlu0 %672
      %v674 = vlaneseq
      %v675 = vshrl.u32 %v674, 7
      %v676 = vadd.s32 %v675, 40
      %677 = vset.pattern.permute.xlu0 %v676
      %678 = vperm.xlu0 %677, %v643
      %v679 = vpop.permute.xlu0 %678
      %v680 = vlaneseq
      %v681 = vshrl.u32 %v680, 7
      %v682 = vadd.s32 %v681, 48
      %683 = vset.pattern.permute.xlu0 %v682
      %684 = vperm.xlu0 %683, %v643
      %v685 = vpop.permute.xlu0 %684
      %v686 = vlaneseq
      %v687 = vshrl.u32 %v686, 7
      %v688 = vadd.s32 %v687, 56
      %689 = vset.pattern.permute.xlu0 %v688
      %690 = vperm.xlu0 %689, %v643
      %v691 = vpop.permute.xlu0 %690
      %v692 = vlaneseq
      %v693 = vshrl.u32 %v692, 7
      %v694 = vadd.s32 %v693, 64
      %695 = vset.pattern.permute.xlu0 %v694
      %696 = vperm.xlu0 %695, %v643
      %v697 = vpop.permute.xlu0 %696
      %v698 = vlaneseq
      %v699 = vshrl.u32 %v698, 7
      %v700 = vadd.s32 %v699, 72
      %701 = vset.pattern.permute.xlu0 %v700
      %702 = vperm.xlu0 %701, %v643
      %v703 = vpop.permute.xlu0 %702
      %v704 = vlaneseq
      %v705 = vshrl.u32 %v704, 7
      %v706 = vadd.s32 %v705, 80
      %707 = vset.pattern.permute.xlu0 %v706
      %708 = vperm.xlu0 %707, %v643
      %v709 = vpop.permute.xlu0 %708
      %v710 = vlaneseq
      %v711 = vshrl.u32 %v710, 7
      %v712 = vadd.s32 %v711, 88
      %713 = vset.pattern.permute.xlu0 %v712
      %714 = vperm.xlu0 %713, %v643
      %v715 = vpop.permute.xlu0 %714
      %v716 = vlaneseq
      %v717 = vshrl.u32 %v716, 7
      %v718 = vadd.s32 %v717, 96
      %719 = vset.pattern.permute.xlu0 %v718
      %720 = vperm.xlu0 %719, %v643
      %v721 = vpop.permute.xlu0 %720
      %v722 = vlaneseq
      %v723 = vshrl.u32 %v722, 7
      %v724 = vadd.s32 %v723, 104
      %725 = vset.pattern.permute.xlu0 %v724
      %726 = vperm.xlu0 %725, %v643
      %v727 = vpop.permute.xlu0 %726
      %v728 = vlaneseq
      %v729 = vshrl.u32 %v728, 7
      %v730 = vadd.s32 %v729, 112
      %731 = vset.pattern.permute.xlu0 %v730
      %732 = vperm.xlu0 %731, %v643
      %v733 = vpop.permute.xlu0 %732
      %v734 = vlaneseq
      %v735 = vshrl.u32 %v734, 7
      %v736 = vadd.s32 %v735, 120
      %737 = vset.pattern.permute.xlu0 %v736
      %738 = vperm.xlu0 %737, %v643
      %v739 = vpop.permute.xlu0 %738
      %v740 = vperm.slane %v642, 1
      %v741 = vlaneseq
      %v742 = vshrl.u32 %v741, 7
      %744 = vset.pattern.permute.xlu0 %v742
      %745 = vperm.xlu0 %744, %v740
      %v746 = vpop.permute.xlu0 %745
      %v747 = vlaneseq
      %v748 = vshrl.u32 %v747, 7
      %v749 = vadd.s32 %v748, 8
      %750 = vset.pattern.permute.xlu0 %v749
      %751 = vperm.xlu0 %750, %v740
      %v752 = vpop.permute.xlu0 %751
      %v753 = vlaneseq
      %v754 = vshrl.u32 %v753, 7
      %v755 = vadd.s32 %v754, 16
      %756 = vset.pattern.permute.xlu0 %v755
      %757 = vperm.xlu0 %756, %v740
      %v758 = vpop.permute.xlu0 %757
      %v759 = vlaneseq
      %v760 = vshrl.u32 %v759, 7
      %v761 = vadd.s32 %v760, 24
      %762 = vset.pattern.permute.xlu0 %v761
      %763 = vperm.xlu0 %762, %v740
      %v764 = vpop.permute.xlu0 %763
      %v765 = vlaneseq
      %v766 = vshrl.u32 %v765, 7
      %v767 = vadd.s32 %v766, 32
      %768 = vset.pattern.permute.xlu0 %v767
      %769 = vperm.xlu0 %768, %v740
      %v770 = vpop.permute.xlu0 %769
      %v771 = vlaneseq
      %v772 = vshrl.u32 %v771, 7
      %v773 = vadd.s32 %v772, 40
      %774 = vset.pattern.permute.xlu0 %v773
      %775 = vperm.xlu0 %774, %v740
      %v776 = vpop.permute.xlu0 %775
      %v777 = vlaneseq
      %v778 = vshrl.u32 %v777, 7
      %v779 = vadd.s32 %v778, 48
      %780 = vset.pattern.permute.xlu0 %v779
      %781 = vperm.xlu0 %780, %v740
      %v782 = vpop.permute.xlu0 %781
      %v783 = vlaneseq
      %v784 = vshrl.u32 %v783, 7
      %v785 = vadd.s32 %v784, 56
      %786 = vset.pattern.permute.xlu0 %v785
      %787 = vperm.xlu0 %786, %v740
      %v788 = vpop.permute.xlu0 %787
      %v789 = vlaneseq
      %v790 = vshrl.u32 %v789, 7
      %v791 = vadd.s32 %v790, 64
      %792 = vset.pattern.permute.xlu0 %v791
      %793 = vperm.xlu0 %792, %v740
      %v794 = vpop.permute.xlu0 %793
      %v795 = vlaneseq
      %v796 = vshrl.u32 %v795, 7
      %v797 = vadd.s32 %v796, 72
      %798 = vset.pattern.permute.xlu0 %v797
      %799 = vperm.xlu0 %798, %v740
      %v800 = vpop.permute.xlu0 %799
      %v801 = vlaneseq
      %v802 = vshrl.u32 %v801, 7
      %v803 = vadd.s32 %v802, 80
      %804 = vset.pattern.permute.xlu0 %v803
      %805 = vperm.xlu0 %804, %v740
      %v806 = vpop.permute.xlu0 %805
      %v807 = vlaneseq
      %v808 = vshrl.u32 %v807, 7
      %v809 = vadd.s32 %v808, 88
      %810 = vset.pattern.permute.xlu0 %v809
      %811 = vperm.xlu0 %810, %v740
      %v812 = vpop.permute.xlu0 %811
      %v813 = vlaneseq
      %v814 = vshrl.u32 %v813, 7
      %v815 = vadd.s32 %v814, 96
      %816 = vset.pattern.permute.xlu0 %v815
      %817 = vperm.xlu0 %816, %v740
      %v818 = vpop.permute.xlu0 %817
      %v819 = vlaneseq
      %v820 = vshrl.u32 %v819, 7
      %v821 = vadd.s32 %v820, 104
      %822 = vset.pattern.permute.xlu0 %v821
      %823 = vperm.xlu0 %822, %v740
      %v824 = vpop.permute.xlu0 %823
      %v825 = vlaneseq
      %v826 = vshrl.u32 %v825, 7
      %v827 = vadd.s32 %v826, 112
      %828 = vset.pattern.permute.xlu0 %v827
      %829 = vperm.xlu0 %828, %v740
      %v830 = vpop.permute.xlu0 %829
      %v831 = vlaneseq
      %v832 = vshrl.u32 %v831, 7
      %v833 = vadd.s32 %v832, 120
      %834 = vset.pattern.permute.xlu0 %v833
      %835 = vperm.xlu0 %834, %v740
      %v836 = vpop.permute.xlu0 %835
      %v837 = vmul.f32 %v233, %v649
      %v838 = vmul.f32 %v234, %v649
      %v839 = vmul.f32 %v235, %v655
      %v840 = vmul.f32 %v236, %v655
      %v841 = vmul.f32 %v237, %v661
      %v842 = vmul.f32 %v238, %v661
      %v843 = vmul.f32 %v239, %v667
      %v844 = vmul.f32 %v240, %v667
      %v845 = vmul.f32 %v241, %v673
      %v846 = vmul.f32 %v242, %v673
      %v847 = vmul.f32 %v243, %v679
      %v848 = vmul.f32 %v244, %v679
      %v849 = vmul.f32 %v245, %v685
      %v850 = vmul.f32 %v246, %v685
      %v851 = vmul.f32 %v247, %v691
      %v852 = vmul.f32 %v248, %v691
      %v853 = vmul.f32 %v249, %v697
      %v854 = vmul.f32 %v250, %v697
      %v855 = vmul.f32 %v251, %v703
      %v856 = vmul.f32 %v252, %v703
      %v857 = vmul.f32 %v253, %v709
      %v858 = vmul.f32 %v254, %v709
      %v859 = vmul.f32 %v255, %v715
      %v860 = vmul.f32 %v256, %v715
      %v861 = vmul.f32 %v257, %v721
      %v862 = vmul.f32 %v258, %v721
      %v863 = vmul.f32 %v259, %v727
      %v864 = vmul.f32 %v260, %v727
      %v865 = vmul.f32 %v261, %v733
      %v866 = vmul.f32 %v262, %v733
      %v867 = vmul.f32 %v263, %v739
      %v868 = vmul.f32 %v264, %v739
      %v869 = vmul.f32 %v265, %v746
      %v870 = vmul.f32 %v266, %v746
      %v871 = vmul.f32 %v267, %v752
      %v872 = vmul.f32 %v268, %v752
      %v873 = vmul.f32 %v269, %v758
      %v874 = vmul.f32 %v270, %v758
      %v875 = vmul.f32 %v271, %v764
      %v876 = vmul.f32 %v272, %v764
      %v877 = vmul.f32 %v273, %v770
      %v878 = vmul.f32 %v274, %v770
      %v879 = vmul.f32 %v275, %v776
      %v880 = vmul.f32 %v276, %v776
      %v881 = vmul.f32 %v277, %v782
      %v882 = vmul.f32 %v278, %v782
      %v883 = vmul.f32 %v279, %v788
      %v884 = vmul.f32 %v280, %v788
      %v885 = vmul.f32 %v281, %v794
      %v886 = vmul.f32 %v282, %v794
      %v887 = vmul.f32 %v283, %v800
      %v888 = vmul.f32 %v284, %v800
      %v889 = vmul.f32 %v285, %v806
      %v890 = vmul.f32 %v286, %v806
      %v891 = vmul.f32 %v287, %v812
      %v892 = vmul.f32 %v288, %v812
      %v893 = vmul.f32 %v289, %v818
      %v894 = vmul.f32 %v290, %v818
      %v895 = vmul.f32 %v291, %v824
      %v896 = vmul.f32 %v292, %v824
      %v897 = vmul.f32 %v293, %v830
      %v898 = vmul.f32 %v294, %v830
      %v899 = vmul.f32 %v295, %v836
      %v900 = vmul.f32 %v296, %v836
      %901 = vst [vmem:[%s231] sm:$0xff] %v837
      %902 = vst [vmem:[%s231 + $0x8] sm:$0xff] %v838
      %903 = vst [vmem:[%s231 + $0x10] sm:$0xff] %v839
      %904 = vst [vmem:[%s231 + $0x18] sm:$0xff] %v840
      %905 = vst [vmem:[%s231 + $0x20] sm:$0xff] %v841
      %906 = vst [vmem:[%s231 + $0x28] sm:$0xff] %v842
      %907 = vst [vmem:[%s231 + $0x30] sm:$0xff] %v843
      %908 = vst [vmem:[%s231 + $0x38] sm:$0xff] %v844
      %909 = vst [vmem:[%s231 + $0x40] sm:$0xff] %v845
      %910 = vst [vmem:[%s231 + $0x48] sm:$0xff] %v846
      %911 = vst [vmem:[%s231 + $0x50] sm:$0xff] %v847
      %912 = vst [vmem:[%s231 + $0x58] sm:$0xff] %v848
      %913 = vst [vmem:[%s231 + $0x60] sm:$0xff] %v849
      %914 = vst [vmem:[%s231 + $0x68] sm:$0xff] %v850
      %915 = vst [vmem:[%s231 + $0x70] sm:$0xff] %v851
      %916 = vst [vmem:[%s231 + $0x78] sm:$0xff] %v852
      %917 = vst [vmem:[%s231 + $0x80] sm:$0xff] %v853
      %918 = vst [vmem:[%s231 + $0x88] sm:$0xff] %v854
      %919 = vst [vmem:[%s231 + $0x90] sm:$0xff] %v855
      %920 = vst [vmem:[%s231 + $0x98] sm:$0xff] %v856
      %921 = vst [vmem:[%s231 + $0xa0] sm:$0xff] %v857
      %922 = vst [vmem:[%s231 + $0xa8] sm:$0xff] %v858
      %923 = vst [vmem:[%s231 + $0xb0] sm:$0xff] %v859
      %924 = vst [vmem:[%s231 + $0xb8] sm:$0xff] %v860
      %925 = vst [vmem:[%s231 + $0xc0] sm:$0xff] %v861
      %926 = vst [vmem:[%s231 + $0xc8] sm:$0xff] %v862
      %927 = vst [vmem:[%s231 + $0xd0] sm:$0xff] %v863
      %928 = vst [vmem:[%s231 + $0xd8] sm:$0xff] %v864
      %929 = vst [vmem:[%s231 + $0xe0] sm:$0xff] %v865
      %930 = vst [vmem:[%s231 + $0xe8] sm:$0xff] %v866
      %931 = vst [vmem:[%s231 + $0xf0] sm:$0xff] %v867
      %932 = vst [vmem:[%s231 + $0xf8] sm:$0xff] %v868
      %933 = vst [vmem:[%s231 + $0x100] sm:$0xff] %v869
      %934 = vst [vmem:[%s231 + $0x108] sm:$0xff] %v870
      %935 = vst [vmem:[%s231 + $0x110] sm:$0xff] %v871
      %936 = vst [vmem:[%s231 + $0x118] sm:$0xff] %v872
      %937 = vst [vmem:[%s231 + $0x120] sm:$0xff] %v873
      %938 = vst [vmem:[%s231 + $0x128] sm:$0xff] %v874
      %939 = vst [vmem:[%s231 + $0x130] sm:$0xff] %v875
      %940 = vst [vmem:[%s231 + $0x138] sm:$0xff] %v876
      %941 = vst [vmem:[%s231 + $0x140] sm:$0xff] %v877
      %942 = vst [vmem:[%s231 + $0x148] sm:$0xff] %v878
      %943 = vst [vmem:[%s231 + $0x150] sm:$0xff] %v879
      %944 = vst [vmem:[%s231 + $0x158] sm:$0xff] %v880
      %945 = vst [vmem:[%s231 + $0x160] sm:$0xff] %v881
      %946 = vst [vmem:[%s231 + $0x168] sm:$0xff] %v882
      %947 = vst [vmem:[%s231 + $0x170] sm:$0xff] %v883
      %948 = vst [vmem:[%s231 + $0x178] sm:$0xff] %v884
      %949 = vst [vmem:[%s231 + $0x180] sm:$0xff] %v885
      %950 = vst [vmem:[%s231 + $0x188] sm:$0xff] %v886
      %951 = vst [vmem:[%s231 + $0x190] sm:$0xff] %v887
      %952 = vst [vmem:[%s231 + $0x198] sm:$0xff] %v888
      %953 = vst [vmem:[%s231 + $0x1a0] sm:$0xff] %v889
      %954 = vst [vmem:[%s231 + $0x1a8] sm:$0xff] %v890
      %955 = vst [vmem:[%s231 + $0x1b0] sm:$0xff] %v891
      %956 = vst [vmem:[%s231 + $0x1b8] sm:$0xff] %v892
      %957 = vst [vmem:[%s231 + $0x1c0] sm:$0xff] %v893
      %958 = vst [vmem:[%s231 + $0x1c8] sm:$0xff] %v894
      %959 = vst [vmem:[%s231 + $0x1d0] sm:$0xff] %v895
      %960 = vst [vmem:[%s231 + $0x1d8] sm:$0xff] %v896
      %961 = vst [vmem:[%s231 + $0x1e0] sm:$0xff] %v897
      %962 = vst [vmem:[%s231 + $0x1e8] sm:$0xff] %v898
      %963 = vst [vmem:[%s231 + $0x1f0] sm:$0xff] %v899
      %964 = vst [vmem:[%s231 + $0x1f8] sm:$0xff] %v900
      %s965 = smul.u32 2, %s16
      %p966 = scmp.lt.s32.totalorder %s965, 3
      %s967 = scalar_select %p966, %s965, 3
      %s968 = smul.addr %s967, 32
      %s969 = smul.addr %s968, 8
      %s970 = scalar_lea.vmem %s5, %s969
      // Predicated region
      $region41: #{se_block.1} parent=39 // pred_check
        %p971 = pneg %p144
      $region42: #{se_block.1} parent=39 // pred_check_branch
        %973 = sbr.rel (%p971) target = $region44
      $region43: #{se_block.1} parent=39 // pred_region
        %s974 = smul.u32 2, %s16
      $region44: #{se_block.1} parent=39 // pred_fallthru
        _
    $region40: #{se_block.1} parent=5 // pred_fallthru
      _
    %p975 = scmp.le.s32.totalorder 2, %s11
    // Predicated region
    $region45: #{se_block.1} parent=5 // pred_check
      %p976 = pneg %p975
    $region46: #{se_block.1} parent=5 // pred_check_branch
      %978 = sbr.rel (%p976) target = $region48
    $region47: #{se_block.1} parent=5 // pred_region
      %s979 = ssub.s32 %s11, 2
      // Predicated region
      $region49: #{se_block.1} parent=47 // pred_check
        %p980 = pneg %p150
      $region50: #{se_block.1} parent=47 // pred_check_branch
        %982 = sbr.rel (%p980) target = $region52
      $region51: #{se_block.1} parent=47 // pred_region
        %s983 = smul.u32 2, %s17
        %p984 = scmp.lt.s32.totalorder %s983, 3
        %s985 = scalar_select %p984, %s983, 3
        %s986 = smul.addr %s985, 32
        %s987 = smul.addr %s986, 8
        %s988 = scalar_lea.vmem %s5, %s987
      $region52: #{se_block.1} parent=47 // pred_fallthru
        _
    $region48: #{se_block.1} parent=5 // pred_fallthru
      _
  $region6: #{se_block.1} parent=0 // loop_footer
    %s15 = sadd.s32 1, %s11
  $region7: #{se_block.1} parent=0 // loop_footer_branch
    %10 = sbr.rel target = $region3
  $region8: #{se_block.1} parent=0 // loop_exit
    _

</llo_original>
